<compile_context>
chip_gen: v6e
topology: v6e:2x2x1
jax: 0.10.0
libtpu: 0.0.40
codegen_flags: <defaults>
</compile_context>

<pallas_src>
import math

import jax
import jax.numpy as jnp
from jax.experimental import pallas as pl
from jax.experimental.pallas import tpu as pltpu


def _ffn_kernel(x_ref, w1_ref, b1_ref, w2_ref, b2_ref, o_ref, acc_ref):
    # x_ref : (tm, E)  bf16        w1_ref: (E, tk) bf16  (pre-transposed, (in, out))
    # b1_ref: (1, tk)  f32         w2_ref: (tk, E) bf16  (pre-transposed, (in, out))
    # b2_ref: (1, E)   f32         o_ref : (tm, E) out dtype
    # acc_ref: (tm, E) f32 accumulator, carried across the k (hidden-chunk) axis.
    k = pl.program_id(1)

    @pl.when(k == 0)
    def _init():
        acc_ref[...] = jnp.zeros_like(acc_ref)

    # h_k = relu(x @ W1t[:, k-chunk] + b1[k-chunk])  -- bf16 MXU inputs, f32 accumulation.
    h = jax.lax.dot_general(
        x_ref[...], w1_ref[...],
        dimension_numbers=(((1,), (0,)), ((), ())),
        preferred_element_type=jnp.float32,
    )
    h = jnp.maximum(h + b1_ref[...], 0.0)

    # Partial second matmul: acc += h_k @ W2t[k-chunk, :].
    # Precision choice: h is downcast to bf16 to feed the MXU at full rate.
    acc_ref[...] += jax.lax.dot_general(
        h.astype(w2_ref.dtype), w2_ref[...],
        dimension_numbers=(((1,), (0,)), ((), ())),
        preferred_element_type=jnp.float32,
    )

    @pl.when(k == pl.num_programs(1) - 1)
    def _finalize():
        o_ref[...] = (acc_ref[...] + b2_ref[...]).astype(o_ref.dtype)


def _round_up(n, m):
    return ((n + m - 1) // m) * m


_WEIGHT_RESIDENT_BUDGET = 32 * 1024 * 1024   # resident bf16 weights kept v7x-safe (64 MiB/TC)
_TILE_BUDGET = 24 * 1024 * 1024              # x/out double buffers + f32 accumulator


def feed_forward(x, w1, b1, w2, b2, *, block_rows=512, compute_dtype=jnp.bfloat16):
    """Pallas TPU implementation of FeedForward.forward.

    x:  (..., E)
    w1, w2: (E, E)  PyTorch nn.Linear weight layout (out_features, in_features)
    b1, b2: (E,)
    """
    E = x.shape[-1]
    orig_shape = x.shape
    out_dtype = x.dtype

    # One-time layout / dtype prep (amortized: weights are grid-resident or streamed).
    x2 = x.reshape(-1, E).astype(compute_dtype)
    w1t = jnp.asarray(w1, dtype=compute_dtype).T            # (in, out)
    w2t = jnp.asarray(w2, dtype=compute_dtype).T            # (in, out)
    b1_2 = jnp.asarray(b1, dtype=jnp.float32).reshape(1, E)
    b2_2 = jnp.asarray(b2, dtype=jnp.float32).reshape(1, E)

    M = x2.shape[0]
    bytes_in = jnp.dtype(compute_dtype).itemsize
    bytes_out = jnp.dtype(out_dtype).itemsize

    # ---- row tile --------------------------------------------------------
    tm = min(block_rows, _round_up(M, 8))
    per_row_bytes = E * (2 * bytes_in + 2 * bytes_out + 4)   # x + out (double) + f32 acc
    max_tm = max(8, (_TILE_BUDGET // per_row_bytes) // 8 * 8)
    tm = max(8, min(tm, max_tm))
    # v7x megacore: ensure the 'parallel' row axis has >= 2 steps when M allows.
    if M > 8 and pl.cdiv(M, tm) < 2:
        tm = max(8, _round_up(pl.cdiv(M, 2), 8))
    grid_m = pl.cdiv(M, tm)

    # ---- hidden-dim tile -------------------------------------------------
    # Keep both ExE weights fully VMEM-resident when they fit; otherwise chunk the
    # hidden dim on a second grid axis and accumulate in an f32 VMEM scratch.
    if 2 * E * E * bytes_in <= _WEIGHT_RESIDENT_BUDGET:
        tk = E
    else:
        tk = 0
        for cand in (1024, 512, 256, 128):
            if cand < E and E % cand == 0:
                tk = cand
                break
        if tk == 0:
            tk = E   # correctness fallback: E not a multiple of 128 -> keep resident
    grid_k = pl.cdiv(E, tk)
    resident = tk == E

    # ---- VMEM budget (scoped limit sized from the actual working set) -----
    w_bufs = 1 if resident else 2
    vmem_bytes = (
        2 * E * tk * bytes_in * w_bufs          # W1^T + W2^T buffers
        + (tk + E) * 4 * 2                      # biases
        + 2 * tm * E * bytes_in                 # x (double-buffered)
        + 2 * tm * E * bytes_out                # out (double-buffered)
        + tm * E * 4                            # f32 accumulator scratch
    )
    vmem_limit = int(min(max(vmem_bytes * 5 // 4 + (2 << 20), 16 << 20), 64 << 20))

    flops = 4 * M * E * E                       # two matmuls, 2*M*E*E each
    weight_bytes = 2 * E * E * bytes_in * (1 if resident else grid_m)
    bytes_accessed = int(M * E * (bytes_in + bytes_out) + weight_bytes + 2 * E * 4)

    def _build(use_single_buffer):
        def _maybe_buffered(shape, index_map, single):
            if single and use_single_buffer:
                return pl.BlockSpec(shape, index_map, pipeline_mode=pl.Buffered(1))
            return pl.BlockSpec(shape, index_map)

        in_specs = [
            pl.BlockSpec((tm, E), lambda i, k: (i, 0)),            # x rows
            _maybe_buffered((E, tk), lambda i, k: (0, k), resident),   # W1^T
            _maybe_buffered((1, tk), lambda i, k: (0, k), resident),   # b1
            _maybe_buffered((tk, E), lambda i, k: (k, 0), resident),   # W2^T
            _maybe_buffered((1, E), lambda i, k: (0, 0), True),        # b2 (always resident)
        ]
        out_spec = pl.BlockSpec((tm, E), lambda i, k: (i, 0))

        return pl.pallas_call(
            _ffn_kernel,
            out_shape=jax.ShapeDtypeStruct((M, E), out_dtype),
            grid_spec=pltpu.PrefetchScalarGridSpec(
                num_scalar_prefetch=0,
                grid=(grid_m, grid_k),
                in_specs=in_specs,
                out_specs=out_spec,
                scratch_shapes=[pltpu.VMEM((tm, E), jnp.float32)],
            ),
            compiler_params=pltpu.CompilerParams(
                dimension_semantics=("parallel", "arbitrary"),
                vmem_limit_bytes=vmem_limit,
            ),
            cost_estimate=pl.CostEstimate(
                flops=flops, transcendentals=0, bytes_accessed=bytes_accessed,
            ),
        )

    try:
        # Preferred: resident weights single-buffered (halves their VMEM footprint).
        out = _build(True)(x2, w1t, b1_2, w2t, b2_2)
    except Exception:
        # Graceful fallback if Buffered(1) is unsupported on this JAX build.
        out = _build(False)(x2, w1t, b1_2, w2t, b2_2)

    return out.reshape(orig_shape)


def _reference_feed_forward(x, w1, b1, w2, b2):
    h = jnp.maximum(jnp.einsum("...i,oi->...o", x, w1) + b1, 0.0)
    return jnp.einsum("...i,oi->...o", h, w2) + b2


if __name__ == "__main__":
    key = jax.random.PRNGKey(0)
    kx, kw1, kb1, kw2, kb2 = jax.random.split(key, 5)

    # Small demo shape consistent with the module (kernel is sized for E >= 128 in prod).
    B, L, E = 2, 8, 32
    scale = 1.0 / math.sqrt(E)

    x = jax.random.normal(kx, (B, L, E), dtype=jnp.float32)
    w1 = jax.random.normal(kw1, (E, E), dtype=jnp.float32) * scale
    b1 = jax.random.normal(kb1, (E,), dtype=jnp.float32) * 0.1
    w2 = jax.random.normal(kw2, (E, E), dtype=jnp.float32) * scale
    b2 = jax.random.normal(kb2, (E,), dtype=jnp.float32) * 0.1

    out = feed_forward(x, w1, b1, w2, b2)
    out = jax.block_until_ready(out)

    ref = _reference_feed_forward(x, w1, b1, w2, b2)
    assert out.shape == (B, L, E)
    # bf16 MXU inputs + f32 accumulation -> looser tolerance than pure fp32.
    max_err = float(jnp.max(jnp.abs(out - ref)))
    assert jnp.allclose(out, ref, atol=3e-2, rtol=3e-2), f"mismatch vs reference, max|diff|={max_err}"

    print("KERNEL_OK")
</pallas_src>

<mosaic_0001>
module attributes {stable_mosaic.version = 11 : i64} {
  func.func @_ffn_kernel(%arg0: i32, %arg1: i32, %arg2: memref<8x32xbf16, #tpu.memory_space<vmem>>, %arg3: memref<32x32xbf16, #tpu.memory_space<vmem>>, %arg4: memref<1x32xf32, #tpu.memory_space<vmem>>, %arg5: memref<32x32xbf16, #tpu.memory_space<vmem>>, %arg6: memref<1x32xf32, #tpu.memory_space<vmem>>, %arg7: memref<8x32xf32, #tpu.memory_space<vmem>>, %arg8: memref<8x32xf32, #tpu.memory_space<vmem>>) attributes {dimension_semantics = [#tpu.dimension_semantics<parallel>, #tpu.dimension_semantics<arbitrary>], iteration_bounds = array<i64: 2, 1>, scalar_prefetch = 0 : i64, scratch_operands = 1 : i64, tpu.core_type = #tpu.core_type<tc>, window_params = [{transform_indices = @transform_0, window_bounds = array<i64: 8, 32>}, {pipeline_mode = #tpu.pipeline_mode<synchronous>, transform_indices = @transform_1, window_bounds = array<i64: 32, 32>}, {pipeline_mode = #tpu.pipeline_mode<synchronous>, transform_indices = @transform_2, window_bounds = array<i64: 1, 32>}, {pipeline_mode = #tpu.pipeline_mode<synchronous>, transform_indices = @transform_3, window_bounds = array<i64: 32, 32>}, {pipeline_mode = #tpu.pipeline_mode<synchronous>, transform_indices = @transform_4, window_bounds = array<i64: 1, 32>}, {transform_indices = @transform_5, window_bounds = array<i64: 8, 32>}]} {
    %c0_i32 = arith.constant 0 : i32
    %0 = arith.cmpi eq, %arg1, %c0_i32 : i32
    %1 = arith.extui %0 : i1 to i32
    %c0_i32_0 = arith.constant 0 : i32
    %2 = arith.cmpi ne, %1, %c0_i32_0 : i32
    scf.if %2 {
      %cst_16 = arith.constant 0.000000e+00 : f32
      %20 = vector.broadcast %cst_16 : f32 to vector<8x32xf32>
      %c0_17 = arith.constant 0 : index
      %c0_18 = arith.constant 0 : index
      %21 = vector.load %arg8[%c0_17, %c0_18] : memref<8x32xf32, #tpu.memory_space<vmem>>, vector<8x32xf32>
      tpu.vector_store %arg8[%c0_17, %c0_18], %20 {strides = array<i32>} : memref<8x32xf32, #tpu.memory_space<vmem>>, vector<8x32xf32>,
    } else {
    }
    %c0 = arith.constant 0 : index
    %c0_1 = arith.constant 0 : index
    %3 = vector.load %arg2[%c0, %c0_1] : memref<8x32xbf16, #tpu.memory_space<vmem>>, vector<8x32xbf16>
    %c0_2 = arith.constant 0 : index
    %c0_3 = arith.constant 0 : index
    %4 = vector.load %arg3[%c0_2, %c0_3] : memref<32x32xbf16, #tpu.memory_space<vmem>>, vector<32x32xbf16>
    %cst = arith.constant dense<0.000000e+00> : vector<8x32xf32>
    %5 = tpu.matmul %3, %4, %cst {dimension_numbers = #tpu.dot_dimension_numbers<[1], [0], [0], [1], [0, 0, 1, 1], [], []>} : vector<8x32xbf16>, vector<32x32xbf16>, vector<8x32xf32> -> vector<8x32xf32>
    %c0_4 = arith.constant 0 : index
    %c0_5 = arith.constant 0 : index
    %6 = vector.load %arg4[%c0_4, %c0_5] : memref<1x32xf32, #tpu.memory_space<vmem>>, vector<1x32xf32>
    %7 = vector.broadcast %6 : vector<1x32xf32> to vector<8x32xf32>
    %8 = arith.addf %5, %7 : vector<8x32xf32>
    %cst_6 = arith.constant 0.000000e+00 : f32
    %9 = vector.broadcast %cst_6 : f32 to vector<8x32xf32>
    %10 = arith.maximumf %8, %9 : vector<8x32xf32>
    %c0_7 = arith.constant 0 : index
    %c0_8 = arith.constant 0 : index
    %11 = vector.load %arg8[%c0_7, %c0_8] : memref<8x32xf32, #tpu.memory_space<vmem>>, vector<8x32xf32>
    %12 = arith.truncf %10 : vector<8x32xf32> to vector<8x32xbf16>
    %c0_9 = arith.constant 0 : index
    %c0_10 = arith.constant 0 : index
    %13 = vector.load %arg5[%c0_9, %c0_10] : memref<32x32xbf16, #tpu.memory_space<vmem>>, vector<32x32xbf16>
    %cst_11 = arith.constant dense<0.000000e+00> : vector<8x32xf32>
    %14 = tpu.matmul %12, %13, %cst_11 {dimension_numbers = #tpu.dot_dimension_numbers<[1], [0], [0], [1], [0, 0, 1, 1], [], []>} : vector<8x32xbf16>, vector<32x32xbf16>, vector<8x32xf32> -> vector<8x32xf32>
    %15 = arith.addf %11, %14 : vector<8x32xf32>
    %c0_12 = arith.constant 0 : index
    %c0_13 = arith.constant 0 : index
    %16 = vector.load %arg8[%c0_12, %c0_13] : memref<8x32xf32, #tpu.memory_space<vmem>>, vector<8x32xf32>
    tpu.vector_store %arg8[%c0_12, %c0_13], %15 {strides = array<i32>} : memref<8x32xf32, #tpu.memory_space<vmem>>, vector<8x32xf32>,
    %c0_i32_14 = arith.constant 0 : i32
    %17 = arith.cmpi eq, %arg1, %c0_i32_14 : i32
    %18 = arith.extui %17 : i1 to i32
    %c0_i32_15 = arith.constant 0 : i32
    %19 = arith.cmpi ne, %18, %c0_i32_15 : i32
    scf.if %19 {
      %c0_16 = arith.constant 0 : index
      %c0_17 = arith.constant 0 : index
      %20 = vector.load %arg8[%c0_16, %c0_17] : memref<8x32xf32, #tpu.memory_space<vmem>>, vector<8x32xf32>
      %c0_18 = arith.constant 0 : index
      %c0_19 = arith.constant 0 : index
      %21 = vector.load %arg6[%c0_18, %c0_19] : memref<1x32xf32, #tpu.memory_space<vmem>>, vector<1x32xf32>
      %22 = vector.broadcast %21 : vector<1x32xf32> to vector<8x32xf32>
      %23 = arith.addf %20, %22 : vector<8x32xf32>
      %c0_20 = arith.constant 0 : index
      %c0_21 = arith.constant 0 : index
      %24 = vector.load %arg7[%c0_20, %c0_21] : memref<8x32xf32, #tpu.memory_space<vmem>>, vector<8x32xf32>
      tpu.vector_store %arg7[%c0_20, %c0_21], %23 {strides = array<i32>} : memref<8x32xf32, #tpu.memory_space<vmem>>, vector<8x32xf32>,
    } else {
    }
    return
  }
  func.func @transform_0(%arg0: i32, %arg1: i32) -> (i32, i32) {
    %c0_i32 = arith.constant 0 : i32
    %c0_i32_0 = arith.constant 0 : i32
    return %arg0, %c0_i32 : i32, i32
  }
  func.func @transform_1(%arg0: i32, %arg1: i32) -> (i32, i32) {
    %c0_i32 = arith.constant 0 : i32
    %c0_i32_0 = arith.constant 0 : i32
    return %c0_i32, %arg1 : i32, i32
  }
  func.func @transform_2(%arg0: i32, %arg1: i32) -> (i32, i32) {
    %c0_i32 = arith.constant 0 : i32
    %c0_i32_0 = arith.constant 0 : i32
    return %c0_i32, %arg1 : i32, i32
  }
  func.func @transform_3(%arg0: i32, %arg1: i32) -> (i32, i32) {
    %c0_i32 = arith.constant 0 : i32
    %c0_i32_0 = arith.constant 0 : i32
    return %arg1, %c0_i32 : i32, i32
  }
  func.func @transform_4(%arg0: i32, %arg1: i32) -> (i32, i32) {
    %c0_i32 = arith.constant 0 : i32
    %c0_i32_0 = arith.constant 0 : i32
    %c0_i32_1 = arith.constant 0 : i32
    return %c0_i32, %c0_i32_0 : i32, i32
  }
  func.func @transform_5(%arg0: i32, %arg1: i32) -> (i32, i32) {
    %c0_i32 = arith.constant 0 : i32
    %c0_i32_0 = arith.constant 0 : i32
    return %arg0, %c0_i32 : i32, i32
  }
}

module attributes {stable_mosaic.version = 11 : i64} {
  func.func @_ffn_kernel(%arg0: i32, %arg1: i32, %arg2: memref<8x32xbf16, #tpu.memory_space<vmem>>, %arg3: memref<32x32xbf16, #tpu.memory_space<vmem>>, %arg4: memref<1x32xf32, #tpu.memory_space<vmem>>, %arg5: memref<32x32xbf16, #tpu.memory_space<vmem>>, %arg6: memref<1x32xf32, #tpu.memory_space<vmem>>, %arg7: memref<8x32xf32, #tpu.memory_space<vmem>>, %arg8: memref<8x32xf32, #tpu.memory_space<vmem>>) attributes {dimension_semantics = [#tpu.dimension_semantics<parallel>, #tpu.dimension_semantics<arbitrary>], iteration_bounds = array<i64: 2, 1>, scalar_prefetch = 0 : i64, scratch_operands = 1 : i64, tpu.core_type = #tpu.core_type<tc>, window_params = [{transform_indices = @transform_0, window_bounds = array<i64: 8, 32>}, {transform_indices = @transform_1, window_bounds = array<i64: 32, 32>}, {transform_indices = @transform_2, window_bounds = array<i64: 1, 32>}, {transform_indices = @transform_3, window_bounds = array<i64: 32, 32>}, {pipeline_mode = #tpu.pipeline_mode<synchronous>, transform_indices = @transform_4, window_bounds = array<i64: 1, 32>}, {transform_indices = @transform_5, window_bounds = array<i64: 8, 32>}]} {
    %c0_i32 = arith.constant 0 : i32
    %0 = arith.cmpi eq, %arg1, %c0_i32 : i32
    %1 = arith.extui %0 : i1 to i32
    %c0_i32_0 = arith.constant 0 : i32
    %2 = arith.cmpi ne, %1, %c0_i32_0 : i32
    scf.if %2 {
      %cst_16 = arith.constant 0.000000e+00 : f32
      %20 = vector.broadcast %cst_16 : f32 to vector<8x32xf32>
      %c0_17 = arith.constant 0 : index
      %c0_18 = arith.constant 0 : index
      %21 = vector.load %arg8[%c0_17, %c0_18] : memref<8x32xf32, #tpu.memory_space<vmem>>, vector<8x32xf32>
      tpu.vector_store %arg8[%c0_17, %c0_18], %20 {strides = array<i32>} : memref<8x32xf32, #tpu.memory_space<vmem>>, vector<8x32xf32>,
    } else {
    }
    %c0 = arith.constant 0 : index
    %c0_1 = arith.constant 0 : index
    %3 = vector.load %arg2[%c0, %c0_1] : memref<8x32xbf16, #tpu.memory_space<vmem>>, vector<8x32xbf16>
    %c0_2 = arith.constant 0 : index
    %c0_3 = arith.constant 0 : index
    %4 = vector.load %arg3[%c0_2, %c0_3] : memref<32x32xbf16, #tpu.memory_space<vmem>>, vector<32x32xbf16>
    %cst = arith.constant dense<0.000000e+00> : vector<8x32xf32>
    %5 = tpu.matmul %3, %4, %cst {dimension_numbers = #tpu.dot_dimension_numbers<[1], [0], [0], [1], [0, 0, 1, 1], [], []>} : vector<8x32xbf16>, vector<32x32xbf16>, vector<8x32xf32> -> vector<8x32xf32>
    %c0_4 = arith.constant 0 : index
    %c0_5 = arith.constant 0 : index
    %6 = vector.load %arg4[%c0_4, %c0_5] : memref<1x32xf32, #tpu.memory_space<vmem>>, vector<1x32xf32>
    %7 = vector.broadcast %6 : vector<1x32xf32> to vector<8x32xf32>
    %8 = arith.addf %5, %7 : vector<8x32xf32>
    %cst_6 = arith.constant 0.000000e+00 : f32
    %9 = vector.broadcast %cst_6 : f32 to vector<8x32xf32>
    %10 = arith.maximumf %8, %9 : vector<8x32xf32>
    %c0_7 = arith.constant 0 : index
    %c0_8 = arith.constant 0 : index
    %11 = vector.load %arg8[%c0_7, %c0_8] : memref<8x32xf32, #tpu.memory_space<vmem>>, vector<8x32xf32>
    %12 = arith.truncf %10 : vector<8x32xf32> to vector<8x32xbf16>
    %c0_9 = arith.constant 0 : index
    %c0_10 = arith.constant 0 : index
    %13 = vector.load %arg5[%c0_9, %c0_10] : memref<32x32xbf16, #tpu.memory_space<vmem>>, vector<32x32xbf16>
    %cst_11 = arith.constant dense<0.000000e+00> : vector<8x32xf32>
    %14 = tpu.matmul %12, %13, %cst_11 {dimension_numbers = #tpu.dot_dimension_numbers<[1], [0], [0], [1], [0, 0, 1, 1], [], []>} : vector<8x32xbf16>, vector<32x32xbf16>, vector<8x32xf32> -> vector<8x32xf32>
    %15 = arith.addf %11, %14 : vector<8x32xf32>
    %c0_12 = arith.constant 0 : index
    %c0_13 = arith.constant 0 : index
    %16 = vector.load %arg8[%c0_12, %c0_13] : memref<8x32xf32, #tpu.memory_space<vmem>>, vector<8x32xf32>
    tpu.vector_store %arg8[%c0_12, %c0_13], %15 {strides = array<i32>} : memref<8x32xf32, #tpu.memory_space<vmem>>, vector<8x32xf32>,
    %c0_i32_14 = arith.constant 0 : i32
    %17 = arith.cmpi eq, %arg1, %c0_i32_14 : i32
    %18 = arith.extui %17 : i1 to i32
    %c0_i32_15 = arith.constant 0 : i32
    %19 = arith.cmpi ne, %18, %c0_i32_15 : i32
    scf.if %19 {
      %c0_16 = arith.constant 0 : index
      %c0_17 = arith.constant 0 : index
      %20 = vector.load %arg8[%c0_16, %c0_17] : memref<8x32xf32, #tpu.memory_space<vmem>>, vector<8x32xf32>
      %c0_18 = arith.constant 0 : index
      %c0_19 = arith.constant 0 : index
      %21 = vector.load %arg6[%c0_18, %c0_19] : memref<1x32xf32, #tpu.memory_space<vmem>>, vector<1x32xf32>
      %22 = vector.broadcast %21 : vector<1x32xf32> to vector<8x32xf32>
      %23 = arith.addf %20, %22 : vector<8x32xf32>
      %c0_20 = arith.constant 0 : index
      %c0_21 = arith.constant 0 : index
      %24 = vector.load %arg7[%c0_20, %c0_21] : memref<8x32xf32, #tpu.memory_space<vmem>>, vector<8x32xf32>
      tpu.vector_store %arg7[%c0_20, %c0_21], %23 {strides = array<i32>} : memref<8x32xf32, #tpu.memory_space<vmem>>, vector<8x32xf32>,
    } else {
    }
    return
  }
  func.func @transform_0(%arg0: i32, %arg1: i32) -> (i32, i32) {
    %c0_i32 = arith.constant 0 : i32
    %c0_i32_0 = arith.constant 0 : i32
    return %arg0, %c0_i32 : i32, i32
  }
  func.func @transform_1(%arg0: i32, %arg1: i32) -> (i32, i32) {
    %c0_i32 = arith.constant 0 : i32
    %c0_i32_0 = arith.constant 0 : i32
    return %c0_i32, %arg1 : i32, i32
  }
  func.func @transform_2(%arg0: i32, %arg1: i32) -> (i32, i32) {
    %c0_i32 = arith.constant 0 : i32
    %c0_i32_0 = arith.constant 0 : i32
    return %c0_i32, %arg1 : i32, i32
  }
  func.func @transform_3(%arg0: i32, %arg1: i32) -> (i32, i32) {
    %c0_i32 = arith.constant 0 : i32
    %c0_i32_0 = arith.constant 0 : i32
    return %arg1, %c0_i32 : i32, i32
  }
  func.func @transform_4(%arg0: i32, %arg1: i32) -> (i32, i32) {
    %c0_i32 = arith.constant 0 : i32
    %c0_i32_0 = arith.constant 0 : i32
    %c0_i32_1 = arith.constant 0 : i32
    return %c0_i32, %c0_i32_0 : i32, i32
  }
  func.func @transform_5(%arg0: i32, %arg1: i32) -> (i32, i32) {
    %c0_i32 = arith.constant 0 : i32
    %c0_i32_0 = arith.constant 0 : i32
    return %arg0, %c0_i32 : i32, i32
  }
}

</mosaic_0001>

<llo_original>
// kernel: tpu_custom_call.1
$region0: #{tpu_custom_call.1}
  #allocation0 [shape = 'u32[]', space=smem, size = 0x4, offset = 0x4, fixed_abs, tag = 'smem constant byte address 0x4 - core index']
  #allocation1 [shape = 'u32[144,128]{1,0:T(1,128)}', space=vmem, size = 0x12000, scoped, tag = 'internal scratch']
  #allocation2 [shape = 'f32[8,32]{1,0:T(8,128)}', space=vmem, size = 0x1000, scoped, tag = 'scratch operand']
  %s0 = inlined_call_operand.hbm [shape: bf16[16,32], index: 0, kind: input, shape index: {}]
  %s1 = inlined_call_operand.hbm [shape: bf16[32,32], index: 1, kind: input, shape index: {}]
  %s2 = inlined_call_operand.vmem [shape: f32[1,32], index: 2, kind: input, shape index: {}]
  %s3 = inlined_call_operand.hbm [shape: bf16[32,32], index: 3, kind: input, shape index: {}]
  %s4 = inlined_call_operand.vmem [shape: f32[1,32], index: 4, kind: input, shape index: {}]
  %s5 = inlined_call_operand.hbm [shape: f32[16,32], index: 5, kind: output, shape index: {}]
  %s6 = sld [smem:[#allocation0]]
  $region73: #{tpu_custom_call.1} parent=0
    _
  %s8 = ssub.s32 1, %s6
  %s9 = scalar_select 0, %s8, %s6
  $region1: #{tpu_custom_call.1} parent=0
    #allocation3 [shape = 'u8[4096]{0}', space=vmem, size = 0x1000, scoped, tag = 'input window, operand 0']
    #allocation4 [shape = 's32[2]{0}', space=sflag, size = 0x8, scoped, tag = 'scoped memory for tpu_custom_call.1']
    #allocation5 [shape = 's32[2]{0}', space=sflag, size = 0x8, scoped, tag = 'scoped memory for tpu_custom_call.1']
    #allocation6 [shape = 'u8[8192]{0}', space=vmem, size = 0x2000, scoped, tag = 'input window, operand 1, single buffered']
    #allocation7 [shape = 's32[1]{0}', space=sflag, size = 0x4, scoped, tag = 'scoped memory for tpu_custom_call.1']
    #allocation8 [shape = 'u8[8192]{0}', space=vmem, size = 0x2000, scoped, tag = 'input window, operand 3, single buffered']
    #allocation9 [shape = 'u8[8192]{0}', space=vmem, size = 0x2000, scoped, tag = 'output window, operand 0']
    %10 = vsyncpa [#allocation4], 0
    %s11 = scalar_lea.sflag [#allocation4], 1
    %12 = vsyncpa %s11, 0
    %13 = vsyncpa [#allocation7], 0
    %14 = vsyncpa [#allocation5], 0
    %s15 = scalar_lea.sflag [#allocation5], 1
    %16 = vsyncpa %s15, 0
    loop: start=0, step=1, limit=4
    $region2: #{tpu_custom_call.1} parent=1 // loop_pre_header
      _
    $region3: #{tpu_custom_call.1} parent=1 // loop_header
      %s18 = sphi 0, %s22
      %p19 = scmp.ge.s32.totalorder %s18, 4
      %s25 = sphi 0, %s37
      %s26 = sphi 0, %s33
      %s27 = sphi 0, %s25
      %s28 = sphi 0, %s26
      %s29 = sphi 0, %s27
      %s30 = sphi 0, %s28
      %s40 = sphi 0, %s42
      %s43 = sphi 0, %s40
      %s44 = sphi 0, %s43
      %s60 = sphi 0, %s44
      %s66 = sphi 0, %s68
      %s69 = sphi 0, %s66
      %s70 = sphi 0, %s69
      %s86 = sphi 0, %s70
      %s92 = sphi 0, %s94
      %s95 = sphi 0, %s92
      %s96 = sphi 0, %s95
      %s112 = sphi 0, %s96
      %s118 = sphi 0, %s120
      %s121 = sphi 0, %s118
      %s122 = sphi 0, %s121
      %s138 = sphi 0, %s122
      %s142 = sphi 0, %s142
      %s144 = sphi 0, %s142
      %s145 = sphi 0, %s144
      %s159 = sphi 0, %s145
      %s165 = sphi 0, %s167
      %s168 = sphi 0, %s165
      %s169 = sphi 0, %s168
      %s185 = sphi 0, %s169
    $region4: #{tpu_custom_call.1} parent=1 // loop_header_branch
      %21 = sbr.rel (%p19) target = $region8
    $region5: #{tpu_custom_call.1} parent=1 // loop_body
      %s23 = ssub.s32 %s18, 1
      %s24 = ssub.s32 %s18, 2
      %s31 = sadd.s32 1, %s26
      %p32 = scmp.ge.s32.totalorder %s31, 1
      %s33 = scalar_select %p32, 0, %s31
      %s34 = sadd.s32 1, %s25
      %s35 = scalar_select %p32, %s34, %s25
      %p36 = scmp.ge.s32.totalorder %s35, 2
      %s37 = scalar_select %p36, 0, %s35
      %s38 = ssub.s32 %s25, %s37
      %p39 = scmp.eq.s32.totalorder %s38, 0
      %s41 = sadd.s32 %s40, 1
      %s42 = scalar_select %p39, %s40, %s41
      %p45 = pneg %p39
      %p46 = scmp.eq.s32.totalorder %s18, 1
      %p47 = por %p45, %p46
      %p48 = scmp.ne.s32.totalorder %s40, %s43
      %p49 = scmp.eq.s32.totalorder %s18, 0
      %p50 = por %p48, %p49
      %p51 = scmp.ne.s32.totalorder %s40, %s43
      %p52 = scmp.eq.s32.totalorder %s23, 1
      %p53 = por %p51, %p52
      %p54 = scmp.ne.s32.totalorder %s43, %s44
      %p55 = scmp.eq.s32.totalorder %s23, 0
      %p56 = por %p54, %p55
      %p57 = scmp.ne.s32.totalorder %s43, %s44
      %p58 = scmp.eq.s32.totalorder %s24, 1
      %p59 = por %p57, %p58
      %p61 = scmp.ne.s32.totalorder %s44, %s60
      %p62 = scmp.eq.s32.totalorder %s24, 0
      %p63 = por %p61, %p62
      %s64 = ssub.s32 %s26, %s33
      %p65 = scmp.eq.s32.totalorder %s64, 0
      %s67 = sadd.s32 %s66, 1
      %s68 = scalar_select %p65, %s66, %s67
      %p71 = pneg %p65
      %p72 = scmp.eq.s32.totalorder %s18, 1
      %p73 = por %p71, %p72
      %p74 = scmp.ne.s32.totalorder %s66, %s69
      %p75 = scmp.eq.s32.totalorder %s18, 0
      %p76 = por %p74, %p75
      %p77 = scmp.ne.s32.totalorder %s66, %s69
      %p78 = scmp.eq.s32.totalorder %s23, 1
      %p79 = por %p77, %p78
      %p80 = scmp.ne.s32.totalorder %s69, %s70
      %p81 = scmp.eq.s32.totalorder %s23, 0
      %p82 = por %p80, %p81
      %p83 = scmp.ne.s32.totalorder %s69, %s70
      %p84 = scmp.eq.s32.totalorder %s24, 1
      %p85 = por %p83, %p84
      %p87 = scmp.ne.s32.totalorder %s70, %s86
      %p88 = scmp.eq.s32.totalorder %s24, 0
      %p89 = por %p87, %p88
      %s90 = ssub.s32 %s26, %s33
      %p91 = scmp.eq.s32.totalorder %s90, 0
      %s93 = sadd.s32 %s92, 1
      %s94 = scalar_select %p91, %s92, %s93
      %p97 = pneg %p91
      %p98 = scmp.eq.s32.totalorder %s18, 1
      %p99 = por %p97, %p98
      %p100 = scmp.ne.s32.totalorder %s92, %s95
      %p101 = scmp.eq.s32.totalorder %s18, 0
      %p102 = por %p100, %p101
      %p103 = scmp.ne.s32.totalorder %s92, %s95
      %p104 = scmp.eq.s32.totalorder %s23, 1
      %p105 = por %p103, %p104
      %p106 = scmp.ne.s32.totalorder %s95, %s96
      %p107 = scmp.eq.s32.totalorder %s23, 0
      %p108 = por %p106, %p107
      %p109 = scmp.ne.s32.totalorder %s95, %s96
      %p110 = scmp.eq.s32.totalorder %s24, 1
      %p111 = por %p109, %p110
      %p113 = scmp.ne.s32.totalorder %s96, %s112
      %p114 = scmp.eq.s32.totalorder %s24, 0
      %p115 = por %p113, %p114
      %s116 = ssub.s32 %s26, %s33
      %p117 = scmp.eq.s32.totalorder %s116, 0
      %s119 = sadd.s32 %s118, 1
      %s120 = scalar_select %p117, %s118, %s119
      %p123 = pneg %p117
      %p124 = scmp.eq.s32.totalorder %s18, 1
      %p125 = por %p123, %p124
      %p126 = scmp.ne.s32.totalorder %s118, %s121
      %p127 = scmp.eq.s32.totalorder %s18, 0
      %p128 = por %p126, %p127
      %p129 = scmp.ne.s32.totalorder %s118, %s121
      %p130 = scmp.eq.s32.totalorder %s23, 1
      %p131 = por %p129, %p130
      %p132 = scmp.ne.s32.totalorder %s121, %s122
      %p133 = scmp.eq.s32.totalorder %s23, 0
      %p134 = por %p132, %p133
      %p135 = scmp.ne.s32.totalorder %s121, %s122
      %p136 = scmp.eq.s32.totalorder %s24, 1
      %p137 = por %p135, %p136
      %p139 = scmp.ne.s32.totalorder %s122, %s138
      %p140 = scmp.eq.s32.totalorder %s24, 0
      %p141 = por %p139, %p140
      %s143 = sadd.s32 %s142, 1
      %p146 = scmp.eq.s32.totalorder %s18, 1
      %p147 = scmp.ne.s32.totalorder %s142, %s144
      %p148 = scmp.eq.s32.totalorder %s18, 0
      %p149 = por %p147, %p148
      %p150 = scmp.ne.s32.totalorder %s142, %s144
      %p151 = scmp.eq.s32.totalorder %s23, 1
      %p152 = por %p150, %p151
      %p153 = scmp.ne.s32.totalorder %s144, %s145
      %p154 = scmp.eq.s32.totalorder %s23, 0
      %p155 = por %p153, %p154
      %p156 = scmp.ne.s32.totalorder %s144, %s145
      %p157 = scmp.eq.s32.totalorder %s24, 1
      %p158 = por %p156, %p157
      %p160 = scmp.ne.s32.totalorder %s145, %s159
      %p161 = scmp.eq.s32.totalorder %s24, 0
      %p162 = por %p160, %p161
      %s163 = ssub.s32 %s25, %s37
      %p164 = scmp.eq.s32.totalorder %s163, 0
      %s166 = sadd.s32 %s165, 1
      %s167 = scalar_select %p164, %s165, %s166
      %p170 = pneg %p164
      %p171 = scmp.eq.s32.totalorder %s18, 1
      %p172 = por %p170, %p171
      %p173 = scmp.ne.s32.totalorder %s165, %s168
      %p174 = scmp.eq.s32.totalorder %s18, 0
      %p175 = por %p173, %p174
      %p176 = scmp.ne.s32.totalorder %s165, %s168
      %p177 = scmp.eq.s32.totalorder %s23, 1
      %p178 = por %p176, %p177
      %p179 = scmp.ne.s32.totalorder %s168, %s169
      %p180 = scmp.eq.s32.totalorder %s23, 0
      %p181 = por %p179, %p180
      %p182 = scmp.ne.s32.totalorder %s168, %s169
      %p183 = scmp.eq.s32.totalorder %s24, 1
      %p184 = por %p182, %p183
      %p186 = scmp.ne.s32.totalorder %s169, %s185
      %p187 = scmp.eq.s32.totalorder %s24, 0
      %p188 = por %p186, %p187
      %p189 = scmp.le.s32.totalorder 1, %s18
      %p190 = scmp.lt.s32.totalorder %s18, 3
      %p191 = pnand %p189, %p190
      %p192 = pneg %p191
      // Predicated region
      $region9: #{tpu_custom_call.1} parent=5 // pred_check
        _
      $region10: #{tpu_custom_call.1} parent=5 // pred_check_branch
        %194 = sbr.rel (%p191) target = $region12
      $region11: #{tpu_custom_call.1} parent=5 // pred_region
        %s195 = ssub.s32 %s18, 1
        // Predicated region
        $region13: #{tpu_custom_call.1} parent=11 // pred_check
          %p196 = pneg %p82
        $region14: #{tpu_custom_call.1} parent=11 // pred_check_branch
          %198 = sbr.rel (%p196) target = $region16
        $region15: #{tpu_custom_call.1} parent=11 // pred_region
          %s200 = ssub.s32 256, 256
          %201 = vsyncadd [#allocation7], %s200
          %s202 = smul.addr %s28, 64
          %s203 = scalar_lea.hbm %s1, %s202
          %s204 = sshll.u32 [#allocation6], 4
          %s205 = int_to_ptr.vmem [resolvable:$true] %s204
          %210 = dma.hbm_to_vmem [thread:$0]  %s203, 256, %s205, [#allocation7], 64, 64, 4
        $region16: #{tpu_custom_call.1} parent=11 // pred_fallthru
          _
        // Predicated region
        $region17: #{tpu_custom_call.1} parent=11 // pred_check
          %p211 = pneg %p108
        $region18: #{tpu_custom_call.1} parent=11 // pred_check_branch
          %213 = sbr.rel (%p211) target = $region20
        $region19: #{tpu_custom_call.1} parent=11 // pred_region
          %p214 = scmp.lt.s32.totalorder %s28, 0
          %s215 = scalar_select %p214, %s28, 0
          %s216 = scalar_lea.vmem %s2, %s215
        $region20: #{tpu_custom_call.1} parent=11 // pred_fallthru
          _
        // Predicated region
        $region21: #{tpu_custom_call.1} parent=11 // pred_check
          %p217 = pneg %p134
        $region22: #{tpu_custom_call.1} parent=11 // pred_check_branch
          %219 = sbr.rel (%p217) target = $region24
        $region23: #{tpu_custom_call.1} parent=11 // pred_region
          %s220 = smul.u32 4, %s28
          %s222 = ssub.s32 256, 256
          %223 = vsyncadd [#allocation7], %s222
          %s224 = smul.addr %s220, 64
          %s225 = scalar_lea.hbm %s3, %s224
          %s226 = sshll.u32 [#allocation8], 4
          %s227 = int_to_ptr.vmem [resolvable:$true] %s226
          %232 = dma.hbm_to_vmem [thread:$0]  %s225, 256, %s227, [#allocation7], 64, 64, 4
        $region24: #{tpu_custom_call.1} parent=11 // pred_fallthru
          _
        // Predicated region
        $region25: #{tpu_custom_call.1} parent=11 // pred_check
          %p233 = pneg %p155
        $region26: #{tpu_custom_call.1} parent=11 // pred_check_branch
          %235 = sbr.rel (%p233) target = $region28
        $region27: #{tpu_custom_call.1} parent=11 // pred_region
          _
        $region28: #{tpu_custom_call.1} parent=11 // pred_fallthru
          _
      $region12: #{tpu_custom_call.1} parent=5 // pred_fallthru
        _
      %p236 = scmp.lt.s32.totalorder %s18, 2
      // Predicated region
      $region29: #{tpu_custom_call.1} parent=5 // pred_check
        %p237 = pneg %p236
      $region30: #{tpu_custom_call.1} parent=5 // pred_check_branch
        %239 = sbr.rel (%p237) target = $region32
      $region31: #{tpu_custom_call.1} parent=5 // pred_region
        // Predicated region
        $region33: #{tpu_custom_call.1} parent=31 // pred_check
          %p240 = pneg %p50
        $region34: #{tpu_custom_call.1} parent=31 // pred_check_branch
          %242 = sbr.rel (%p240) target = $region36
        $region35: #{tpu_custom_call.1} parent=31 // pred_region
          %s243 = sand.u32 %s40, 1
          %s244 = scalar_lea.sflag [#allocation4], %s243
          %s245 = sand.u32 %s40, 1
          %s246 = smul.addr %s245, 4
          %s247 = scalar_lea.vmem [#allocation3], %s246
          %s249 = ssub.s32 64, 64
          %250 = vsyncadd %s244, %s249
          %s251 = smul.addr %s25, 64
          %s252 = scalar_lea.hbm %s0, %s251
          %s254 = sshll.u32 %s247, 4
          %s255 = int_to_ptr.vmem [resolvable:$true] %s254
          %257 = dma.hbm_to_vmem [thread:$0]  %s252, 64, %s255, %s244
        $region36: #{tpu_custom_call.1} parent=31 // pred_fallthru
          _
      $region32: #{tpu_custom_call.1} parent=5 // pred_fallthru
        _
      %p258 = scmp.le.s32.totalorder 1, %s18
      %p259 = scmp.lt.s32.totalorder %s18, 3
      %p260 = pnand %p258, %p259
      %p261 = pneg %p260
      // Predicated region
      $region37: #{tpu_custom_call.1} parent=5 // pred_check
        _
      $region38: #{tpu_custom_call.1} parent=5 // pred_check_branch
        %263 = sbr.rel (%p260) target = $region40
      $region39: #{tpu_custom_call.1} parent=5 // pred_region
        %s264 = ssub.s32 %s18, 1
        %s265 = sand.u32 %s43, 1
        %s266 = scalar_lea.sflag [#allocation4], %s265
        %s267 = sand.u32 %s43, 1
        %s268 = smul.addr %s267, 4
        %s269 = scalar_lea.vmem [#allocation3], %s268
        // Predicated region
        $region41: #{tpu_custom_call.1} parent=39 // pred_check
          %p270 = pneg %p56
        $region42: #{tpu_custom_call.1} parent=39 // pred_check_branch
          %272 = sbr.rel (%p270) target = $region44
        $region43: #{tpu_custom_call.1} parent=39 // pred_region
          %273 = dma.done %s266, 64
        $region44: #{tpu_custom_call.1} parent=39 // pred_fallthru
          _
        // Predicated region
        $region45: #{tpu_custom_call.1} parent=39 // pred_check
          %p274 = pneg %p82
        $region46: #{tpu_custom_call.1} parent=39 // pred_check_branch
          %276 = sbr.rel (%p274) target = $region48
        $region47: #{tpu_custom_call.1} parent=39 // pred_region
          %277 = dma.done [#allocation7], 256
        $region48: #{tpu_custom_call.1} parent=39 // pred_fallthru
          _
        // Predicated region
        $region49: #{tpu_custom_call.1} parent=39 // pred_check
          %p278 = pneg %p134
        $region50: #{tpu_custom_call.1} parent=39 // pred_check_branch
          %280 = sbr.rel (%p278) target = $region52
        $region51: #{tpu_custom_call.1} parent=39 // pred_region
          %281 = dma.done [#allocation7], 256
        $region52: #{tpu_custom_call.1} parent=39 // pred_fallthru
          _
        %s282 = sand.u32 %s43, 1
        %s283 = scalar_lea.sflag [#allocation4], %s282
        %s284 = sand.u32 %s43, 1
        %s285 = smul.addr %s284, 4
        %s286 = scalar_lea.vmem [#allocation3], %s285
        %p287 = pneg %p56
        %p288 = pneg %p53
        %p289 = pneg %p82
        %p290 = pneg %p79
        %p291 = scmp.lt.s32.totalorder %s28, 0
        %s292 = scalar_select %p291, %s28, 0
        %s293 = scalar_lea.vmem %s2, %s292
        %p294 = pneg %p108
        %p295 = pneg %p105
        %p296 = pneg %p134
        %p297 = pneg %p131
        %p298 = pneg %p155
        %p299 = pneg %p152
        %p300 = pneg %p181
        %p301 = pneg %p178
        %s302 = sand.u32 %s168, 1
        %s303 = scalar_lea.sflag [#allocation5], %s302
        %s304 = sand.u32 %s168, 1
        %s305 = smul.addr %s304, 8
        %s306 = scalar_lea.vmem [#allocation9], %s305
        %p307 = scmp.lt.s32.totalorder %s28, 0
        %s308 = scalar_select %p307, %s28, 0
        %s309 = scalar_lea.vmem %s2, %s308
        %s310 = smul.u32 4, %s28
        %p312 = scmp.eq.s32.totalorder %s28, 0
        // Predicated region
        $region53: #{tpu_custom_call.1} parent=39 // pred_check
          %p313 = pneg %p312
        $region54: #{tpu_custom_call.1} parent=39 // pred_check_branch
          %315 = sbr.rel (%p313) target = $region56
        $region55: #{tpu_custom_call.1} parent=39 // pred_region
          %vm316 = vcmask 261120
          %317 = vst.msk [vmem:[#allocation2] sm:$0xff] %vm316, 0.0
        $region56: #{tpu_custom_call.1} parent=39 // pred_fallthru
          _
        %v318 = vld [vmem:[%s269] sm:$0xf]
        %v319 = vld [vmem:[#allocation6] sm:$0xf]
        %v320 = vld [vmem:[#allocation6 + $0x4] sm:$0xf]
        %v321 = vld [vmem:[#allocation6 + $0x8] sm:$0xf]
        %v322 = vld [vmem:[#allocation6 + $0xc] sm:$0xf]
        %v323 = vld [vmem:[%s309] sm:$0x1]
        %v325 = vlaneseq
        %v326 = vshrl.u32 %v325, 7
        %v327 = vsub.s32 0, %v326
        %v328 = vrot.slane %v323, %v327
        %v334 = vunpack.c.l.b16 %v319
        %v335 = vunpack.c.l.b16 %v320
        %v336 = vunpack.c.l.b16 %v321
        %v337 = vunpack.c.l.b16 %v322
        %v338 = vpack.c.b16 %v335, %v334
        %v339 = vpack.c.b16 %v337, %v336
        %vm342 = vcmask 261120
        %v344 = vsel %vm342, %v318, 0
        %346 = vmatprep.subr.bf16.mxu0 0
        %347 = vmatpush1.bf16.msra.mxu0 0
        %348 = vmatprep.subr.bf16.mxu0 0
        %349 = vmatpush1.bf16.msra.mxu0 0
        %350 = vmatprep.subr.bf16.mxu0 0
        %351 = vmatpush1.bf16.msra.mxu0 0
        %352 = vmatprep.subr.bf16.mxu0 0
        %353 = vmatpush1.bf16.msra.mxu0 0
        %354 = vmatprep.subr.bf16.mxu0 0
        %355 = vmatpush1.bf16.msra.mxu0 0
        %356 = vmatprep.subr.bf16.mxu0 0
        %357 = vmatpush1.bf16.msra.mxu0 0
        %358 = vmatprep.subr.bf16.mxu0 0
        %359 = vmatpush1.bf16.msra.mxu0 %v339
        %360 = vmatprep.subr.bf16.mxu0 0
        %361 = vmatpush1.bf16.msra.mxu0 %v338
        %362 = vmatprep.subr.bf16.mxu0 0
        %363 = vmatpush2.bf16.msra.mxu0 0
        %364 = vmatprep.subr.bf16.mxu0 0
        %365 = vmatpush2.bf16.msra.mxu0 0
        %366 = vmatprep.subr.bf16.mxu0 0
        %367 = vmatpush2.bf16.msra.mxu0 0
        %368 = vmatprep.subr.bf16.mxu0 0
        %369 = vmatpush2.bf16.msra.mxu0 0
        %370 = vmatprep.subr.bf16.mxu0 0
        %371 = vmatpush2.bf16.msra.mxu0 0
        %372 = vmatprep.subr.bf16.mxu0 0
        %373 = vmatpush2.bf16.msra.mxu0 0
        %374 = vmatprep.subr.bf16.mxu0 0
        %375 = vmatpush2.bf16.msra.mxu0 0
        %376 = vmatprep.subr.bf16.mxu0 0
        %377 = vmatpush2.bf16.msra.mxu0 0
        %378 = vmatprep.mubr.bf16.mxu0 0
        %379 = vmatmul.mubr.bf16.gmra.mxu0 %v344
        %v380 = vpop.f32.mrf.mxu0
        %v381 = vadd.f32 %v328, %v380
        %v382 = vpop.f32.mrf.mxu0
        %v383 = vpop.f32.mrf.mxu0
        %v384 = vpop.f32.mrf.mxu0
        %385 = vdwg.mxu0
        %v386 = vmax.f32 %v381, 0.0
        %v387 = vld [vmem:[#allocation2] sm:$0xff]
        %v388 = vpack.c.bf16 %v386, %v386
        %v389 = vld [vmem:[#allocation8] sm:$0xf]
        %v390 = vld [vmem:[#allocation8 + $0x4] sm:$0xf]
        %v391 = vld [vmem:[#allocation8 + $0x8] sm:$0xf]
        %v392 = vld [vmem:[#allocation8 + $0xc] sm:$0xf]
        %v397 = vunpack.c.l.b16 %v389
        %v398 = vunpack.c.l.b16 %v390
        %v399 = vunpack.c.l.b16 %v391
        %v400 = vunpack.c.l.b16 %v392
        %v401 = vpack.c.b16 %v398, %v397
        %v402 = vpack.c.b16 %v400, %v399
        %v406 = vsel %vm342, %v388, 0
        %408 = vmatprep.subr.bf16.mxu0 0
        %409 = vmatpush1.bf16.msra.mxu0 0
        %410 = vmatprep.subr.bf16.mxu0 0
        %411 = vmatpush1.bf16.msra.mxu0 0
        %412 = vmatprep.subr.bf16.mxu0 0
        %413 = vmatpush1.bf16.msra.mxu0 0
        %414 = vmatprep.subr.bf16.mxu0 0
        %415 = vmatpush1.bf16.msra.mxu0 0
        %416 = vmatprep.subr.bf16.mxu0 0
        %417 = vmatpush1.bf16.msra.mxu0 0
        %418 = vmatprep.subr.bf16.mxu0 0
        %419 = vmatpush1.bf16.msra.mxu0 0
        %420 = vmatprep.subr.bf16.mxu0 0
        %421 = vmatpush1.bf16.msra.mxu0 %v402
        %422 = vmatprep.subr.bf16.mxu0 0
        %423 = vmatpush1.bf16.msra.mxu0 %v401
        %424 = vmatprep.subr.bf16.mxu0 0
        %425 = vmatpush2.bf16.msra.mxu0 0
        %426 = vmatprep.subr.bf16.mxu0 0
        %427 = vmatpush2.bf16.msra.mxu0 0
        %428 = vmatprep.subr.bf16.mxu0 0
        %429 = vmatpush2.bf16.msra.mxu0 0
        %430 = vmatprep.subr.bf16.mxu0 0
        %431 = vmatpush2.bf16.msra.mxu0 0
        %432 = vmatprep.subr.bf16.mxu0 0
        %433 = vmatpush2.bf16.msra.mxu0 0
        %434 = vmatprep.subr.bf16.mxu0 0
        %435 = vmatpush2.bf16.msra.mxu0 0
        %436 = vmatprep.subr.bf16.mxu0 0
        %437 = vmatpush2.bf16.msra.mxu0 0
        %438 = vmatprep.subr.bf16.mxu0 0
        %439 = vmatpush2.bf16.msra.mxu0 0
        %440 = vmatprep.mubr.bf16.mxu0 0
        %441 = vmatmul.mubr.bf16.gmra.mxu0 %v406
        %v442 = vpop.f32.mrf.mxu0
        %v443 = vadd.f32 0.0, %v442
        %v444 = vpop.f32.mrf.mxu0
        %v445 = vpop.f32.mrf.mxu0
        %v446 = vpop.f32.mrf.mxu0
        %447 = vdwg.mxu0
        %v448 = vadd.f32 %v387, %v443
        %449 = vst.msk [vmem:[#allocation2] sm:$0xff] %vm342, %v448
        // Predicated region
        $region57: #{tpu_custom_call.1} parent=39 // pred_check
          %p450 = pneg %p312
        $region58: #{tpu_custom_call.1} parent=39 // pred_check_branch
          %452 = sbr.rel (%p450) target = $region60
        $region59: #{tpu_custom_call.1} parent=39 // pred_region
          %v453 = vld [vmem:[#allocation2] sm:$0xff]
          %v454 = vld [vmem:[%s4] sm:$0x1]
          %v456 = vlaneseq
          %v457 = vshrl.u32 %v456, 7
          %v458 = vsub.s32 0, %v457
          %v459 = vrot.slane %v454, %v458
          %v461 = vadd.f32 %v453, %v459
          %462 = vst.msk [vmem:[%s306] sm:$0xff] %vm342, %v461
        $region60: #{tpu_custom_call.1} parent=39 // pred_fallthru
          _
        %s463 = sand.u32 %s168, 1
        %s464 = scalar_lea.sflag [#allocation5], %s463
        %s465 = sand.u32 %s168, 1
        %s466 = smul.addr %s465, 8
        %s467 = scalar_lea.vmem [#allocation9], %s466
        // Predicated region
        $region61: #{tpu_custom_call.1} parent=39 // pred_check
          %p468 = pneg %p178
        $region62: #{tpu_custom_call.1} parent=39 // pred_check_branch
          %470 = sbr.rel (%p468) target = $region64
        $region63: #{tpu_custom_call.1} parent=39 // pred_region
          %s472 = ssub.s32 128, 128
          %473 = vsyncadd %s464, %s472
          %s474 = smul.addr %s27, 128
          %s475 = scalar_lea.hbm %s5, %s474
          %s477 = sshll.u32 %s467, 4
          %s478 = int_to_ptr.vmem [resolvable:$true] %s477
          %480 = dma.vmem_to_hbm [thread:$0]  %s478, 128, %s475, %s464
        $region64: #{tpu_custom_call.1} parent=39 // pred_fallthru
          _
      $region40: #{tpu_custom_call.1} parent=5 // pred_fallthru
        _
      %p481 = scmp.le.s32.totalorder 2, %s18
      // Predicated region
      $region65: #{tpu_custom_call.1} parent=5 // pred_check
        %p482 = pneg %p481
      $region66: #{tpu_custom_call.1} parent=5 // pred_check_branch
        %484 = sbr.rel (%p482) target = $region68
      $region67: #{tpu_custom_call.1} parent=5 // pred_region
        %s485 = ssub.s32 %s18, 2
        // Predicated region
        $region69: #{tpu_custom_call.1} parent=67 // pred_check
          %p486 = pneg %p184
        $region70: #{tpu_custom_call.1} parent=67 // pred_check_branch
          %488 = sbr.rel (%p486) target = $region72
        $region71: #{tpu_custom_call.1} parent=67 // pred_region
          %s489 = sand.u32 %s169, 1
          %s490 = scalar_lea.sflag [#allocation5], %s489
          %s491 = sand.u32 %s169, 1
          %s492 = smul.addr %s491, 8
          %s493 = scalar_lea.vmem [#allocation9], %s492
          %494 = dma.done %s490, 128
        $region72: #{tpu_custom_call.1} parent=67 // pred_fallthru
          _
      $region68: #{tpu_custom_call.1} parent=5 // pred_fallthru
        _
    $region6: #{tpu_custom_call.1} parent=1 // loop_footer
      %s22 = sadd.s32 1, %s18
    $region7: #{tpu_custom_call.1} parent=1 // loop_footer_branch
      %17 = sbr.rel target = $region3
    $region8: #{tpu_custom_call.1} parent=1 // loop_exit
      _
    %495 = vsyncpa [#allocation4], 1
    %s496 = scalar_lea.sflag [#allocation4], 1
    %497 = vsyncpa %s496, 1
    %498 = vsyncpa [#allocation7], 1
    %499 = vsyncpa [#allocation5], 1
    %s500 = scalar_lea.sflag [#allocation5], 1
    %501 = vsyncpa %s500, 1

// kernel: tpu_custom_call.1
$region0: #{tpu_custom_call.1}
  #allocation0 [shape = 'u32[]', space=smem, size = 0x4, offset = 0x4, fixed_abs, tag = 'smem constant byte address 0x4 - core index']
  #allocation1 [shape = 'u32[144,128]{1,0:T(1,128)}', space=vmem, size = 0x12000, scoped, tag = 'internal scratch']
  #allocation2 [shape = 'f32[8,32]{1,0:T(8,128)}', space=vmem, size = 0x1000, scoped, tag = 'scratch operand']
  %s0 = inlined_call_operand.hbm [shape: bf16[16,32], index: 0, kind: input, shape index: {}]
  %s1 = inlined_call_operand.hbm [shape: bf16[32,32], index: 1, kind: input, shape index: {}]
  %s2 = inlined_call_operand.vmem [shape: f32[1,32], index: 2, kind: input, shape index: {}]
  %s3 = inlined_call_operand.hbm [shape: bf16[32,32], index: 3, kind: input, shape index: {}]
  %s4 = inlined_call_operand.vmem [shape: f32[1,32], index: 4, kind: input, shape index: {}]
  %s5 = inlined_call_operand.hbm [shape: f32[16,32], index: 5, kind: output, shape index: {}]
  %s6 = sld [smem:[#allocation0]]
  $region73: #{tpu_custom_call.1} parent=0
    _
  %s8 = ssub.s32 1, %s6
  %s9 = scalar_select 0, %s8, %s6
  $region1: #{tpu_custom_call.1} parent=0
    #allocation3 [shape = 'u8[4096]{0}', space=vmem, size = 0x1000, scoped, tag = 'input window, operand 0']
    #allocation4 [shape = 's32[2]{0}', space=sflag, size = 0x8, scoped, tag = 'scoped memory for tpu_custom_call.1']
    #allocation5 [shape = 's32[2]{0}', space=sflag, size = 0x8, scoped, tag = 'scoped memory for tpu_custom_call.1']
    #allocation6 [shape = 'u8[8192]{0}', space=vmem, size = 0x2000, scoped, tag = 'input window, operand 1, single buffered']
    #allocation7 [shape = 's32[1]{0}', space=sflag, size = 0x4, scoped, tag = 'scoped memory for tpu_custom_call.1']
    #allocation8 [shape = 'u8[8192]{0}', space=vmem, size = 0x2000, scoped, tag = 'input window, operand 3, single buffered']
    #allocation9 [shape = 'u8[8192]{0}', space=vmem, size = 0x2000, scoped, tag = 'output window, operand 0']
    %10 = vsyncpa [#allocation4], 0
    %s11 = scalar_lea.sflag [#allocation4], 1
    %12 = vsyncpa %s11, 0
    %13 = vsyncpa [#allocation7], 0
    %14 = vsyncpa [#allocation5], 0
    %s15 = scalar_lea.sflag [#allocation5], 1
    %16 = vsyncpa %s15, 0
    loop: start=0, step=1, limit=4
    $region2: #{tpu_custom_call.1} parent=1 // loop_pre_header
      _
    $region3: #{tpu_custom_call.1} parent=1 // loop_header
      %s18 = sphi 0, %s22
      %p19 = scmp.ge.s32.totalorder %s18, 4
      %s25 = sphi 0, %s37
      %s26 = sphi 0, %s33
      %s27 = sphi 0, %s25
      %s28 = sphi 0, %s26
      %s29 = sphi 0, %s27
      %s30 = sphi 0, %s28
      %s40 = sphi 0, %s42
      %s43 = sphi 0, %s40
      %s44 = sphi 0, %s43
      %s60 = sphi 0, %s44
      %s66 = sphi 0, %s68
      %s69 = sphi 0, %s66
      %s70 = sphi 0, %s69
      %s86 = sphi 0, %s70
      %s92 = sphi 0, %s94
      %s95 = sphi 0, %s92
      %s96 = sphi 0, %s95
      %s112 = sphi 0, %s96
      %s118 = sphi 0, %s120
      %s121 = sphi 0, %s118
      %s122 = sphi 0, %s121
      %s138 = sphi 0, %s122
      %s142 = sphi 0, %s142
      %s144 = sphi 0, %s142
      %s145 = sphi 0, %s144
      %s159 = sphi 0, %s145
      %s165 = sphi 0, %s167
      %s168 = sphi 0, %s165
      %s169 = sphi 0, %s168
      %s185 = sphi 0, %s169
    $region4: #{tpu_custom_call.1} parent=1 // loop_header_branch
      %21 = sbr.rel (%p19) target = $region8
    $region5: #{tpu_custom_call.1} parent=1 // loop_body
      %s23 = ssub.s32 %s18, 1
      %s24 = ssub.s32 %s18, 2
      %s31 = sadd.s32 1, %s26
      %p32 = scmp.ge.s32.totalorder %s31, 1
      %s33 = scalar_select %p32, 0, %s31
      %s34 = sadd.s32 1, %s25
      %s35 = scalar_select %p32, %s34, %s25
      %p36 = scmp.ge.s32.totalorder %s35, 2
      %s37 = scalar_select %p36, 0, %s35
      %s38 = ssub.s32 %s25, %s37
      %p39 = scmp.eq.s32.totalorder %s38, 0
      %s41 = sadd.s32 %s40, 1
      %s42 = scalar_select %p39, %s40, %s41
      %p45 = pneg %p39
      %p46 = scmp.eq.s32.totalorder %s18, 1
      %p47 = por %p45, %p46
      %p48 = scmp.ne.s32.totalorder %s40, %s43
      %p49 = scmp.eq.s32.totalorder %s18, 0
      %p50 = por %p48, %p49
      %p51 = scmp.ne.s32.totalorder %s40, %s43
      %p52 = scmp.eq.s32.totalorder %s23, 1
      %p53 = por %p51, %p52
      %p54 = scmp.ne.s32.totalorder %s43, %s44
      %p55 = scmp.eq.s32.totalorder %s23, 0
      %p56 = por %p54, %p55
      %p57 = scmp.ne.s32.totalorder %s43, %s44
      %p58 = scmp.eq.s32.totalorder %s24, 1
      %p59 = por %p57, %p58
      %p61 = scmp.ne.s32.totalorder %s44, %s60
      %p62 = scmp.eq.s32.totalorder %s24, 0
      %p63 = por %p61, %p62
      %s64 = ssub.s32 %s26, %s33
      %p65 = scmp.eq.s32.totalorder %s64, 0
      %s67 = sadd.s32 %s66, 1
      %s68 = scalar_select %p65, %s66, %s67
      %p71 = pneg %p65
      %p72 = scmp.eq.s32.totalorder %s18, 1
      %p73 = por %p71, %p72
      %p74 = scmp.ne.s32.totalorder %s66, %s69
      %p75 = scmp.eq.s32.totalorder %s18, 0
      %p76 = por %p74, %p75
      %p77 = scmp.ne.s32.totalorder %s66, %s69
      %p78 = scmp.eq.s32.totalorder %s23, 1
      %p79 = por %p77, %p78
      %p80 = scmp.ne.s32.totalorder %s69, %s70
      %p81 = scmp.eq.s32.totalorder %s23, 0
      %p82 = por %p80, %p81
      %p83 = scmp.ne.s32.totalorder %s69, %s70
      %p84 = scmp.eq.s32.totalorder %s24, 1
      %p85 = por %p83, %p84
      %p87 = scmp.ne.s32.totalorder %s70, %s86
      %p88 = scmp.eq.s32.totalorder %s24, 0
      %p89 = por %p87, %p88
      %s90 = ssub.s32 %s26, %s33
      %p91 = scmp.eq.s32.totalorder %s90, 0
      %s93 = sadd.s32 %s92, 1
      %s94 = scalar_select %p91, %s92, %s93
      %p97 = pneg %p91
      %p98 = scmp.eq.s32.totalorder %s18, 1
      %p99 = por %p97, %p98
      %p100 = scmp.ne.s32.totalorder %s92, %s95
      %p101 = scmp.eq.s32.totalorder %s18, 0
      %p102 = por %p100, %p101
      %p103 = scmp.ne.s32.totalorder %s92, %s95
      %p104 = scmp.eq.s32.totalorder %s23, 1
      %p105 = por %p103, %p104
      %p106 = scmp.ne.s32.totalorder %s95, %s96
      %p107 = scmp.eq.s32.totalorder %s23, 0
      %p108 = por %p106, %p107
      %p109 = scmp.ne.s32.totalorder %s95, %s96
      %p110 = scmp.eq.s32.totalorder %s24, 1
      %p111 = por %p109, %p110
      %p113 = scmp.ne.s32.totalorder %s96, %s112
      %p114 = scmp.eq.s32.totalorder %s24, 0
      %p115 = por %p113, %p114
      %s116 = ssub.s32 %s26, %s33
      %p117 = scmp.eq.s32.totalorder %s116, 0
      %s119 = sadd.s32 %s118, 1
      %s120 = scalar_select %p117, %s118, %s119
      %p123 = pneg %p117
      %p124 = scmp.eq.s32.totalorder %s18, 1
      %p125 = por %p123, %p124
      %p126 = scmp.ne.s32.totalorder %s118, %s121
      %p127 = scmp.eq.s32.totalorder %s18, 0
      %p128 = por %p126, %p127
      %p129 = scmp.ne.s32.totalorder %s118, %s121
      %p130 = scmp.eq.s32.totalorder %s23, 1
      %p131 = por %p129, %p130
      %p132 = scmp.ne.s32.totalorder %s121, %s122
      %p133 = scmp.eq.s32.totalorder %s23, 0
      %p134 = por %p132, %p133
      %p135 = scmp.ne.s32.totalorder %s121, %s122
      %p136 = scmp.eq.s32.totalorder %s24, 1
      %p137 = por %p135, %p136
      %p139 = scmp.ne.s32.totalorder %s122, %s138
      %p140 = scmp.eq.s32.totalorder %s24, 0
      %p141 = por %p139, %p140
      %s143 = sadd.s32 %s142, 1
      %p146 = scmp.eq.s32.totalorder %s18, 1
      %p147 = scmp.ne.s32.totalorder %s142, %s144
      %p148 = scmp.eq.s32.totalorder %s18, 0
      %p149 = por %p147, %p148
      %p150 = scmp.ne.s32.totalorder %s142, %s144
      %p151 = scmp.eq.s32.totalorder %s23, 1
      %p152 = por %p150, %p151
      %p153 = scmp.ne.s32.totalorder %s144, %s145
      %p154 = scmp.eq.s32.totalorder %s23, 0
      %p155 = por %p153, %p154
      %p156 = scmp.ne.s32.totalorder %s144, %s145
      %p157 = scmp.eq.s32.totalorder %s24, 1
      %p158 = por %p156, %p157
      %p160 = scmp.ne.s32.totalorder %s145, %s159
      %p161 = scmp.eq.s32.totalorder %s24, 0
      %p162 = por %p160, %p161
      %s163 = ssub.s32 %s25, %s37
      %p164 = scmp.eq.s32.totalorder %s163, 0
      %s166 = sadd.s32 %s165, 1
      %s167 = scalar_select %p164, %s165, %s166
      %p170 = pneg %p164
      %p171 = scmp.eq.s32.totalorder %s18, 1
      %p172 = por %p170, %p171
      %p173 = scmp.ne.s32.totalorder %s165, %s168
      %p174 = scmp.eq.s32.totalorder %s18, 0
      %p175 = por %p173, %p174
      %p176 = scmp.ne.s32.totalorder %s165, %s168
      %p177 = scmp.eq.s32.totalorder %s23, 1
      %p178 = por %p176, %p177
      %p179 = scmp.ne.s32.totalorder %s168, %s169
      %p180 = scmp.eq.s32.totalorder %s23, 0
      %p181 = por %p179, %p180
      %p182 = scmp.ne.s32.totalorder %s168, %s169
      %p183 = scmp.eq.s32.totalorder %s24, 1
      %p184 = por %p182, %p183
      %p186 = scmp.ne.s32.totalorder %s169, %s185
      %p187 = scmp.eq.s32.totalorder %s24, 0
      %p188 = por %p186, %p187
      %p189 = scmp.le.s32.totalorder 1, %s18
      %p190 = scmp.lt.s32.totalorder %s18, 3
      %p191 = pnand %p189, %p190
      %p192 = pneg %p191
      // Predicated region
      $region9: #{tpu_custom_call.1} parent=5 // pred_check
        _
      $region10: #{tpu_custom_call.1} parent=5 // pred_check_branch
        %194 = sbr.rel (%p191) target = $region12
      $region11: #{tpu_custom_call.1} parent=5 // pred_region
        %s195 = ssub.s32 %s18, 1
        // Predicated region
        $region13: #{tpu_custom_call.1} parent=11 // pred_check
          %p196 = pneg %p82
        $region14: #{tpu_custom_call.1} parent=11 // pred_check_branch
          %198 = sbr.rel (%p196) target = $region16
        $region15: #{tpu_custom_call.1} parent=11 // pred_region
          %s200 = ssub.s32 256, 256
          %201 = vsyncadd [#allocation7], %s200
          %s202 = smul.addr %s28, 64
          %s203 = scalar_lea.hbm %s1, %s202
          %s204 = sshll.u32 [#allocation6], 4
          %s205 = int_to_ptr.vmem [resolvable:$true] %s204
          %210 = dma.hbm_to_vmem [thread:$0]  %s203, 256, %s205, [#allocation7], 64, 64, 4
        $region16: #{tpu_custom_call.1} parent=11 // pred_fallthru
          _
        // Predicated region
        $region17: #{tpu_custom_call.1} parent=11 // pred_check
          %p211 = pneg %p108
        $region18: #{tpu_custom_call.1} parent=11 // pred_check_branch
          %213 = sbr.rel (%p211) target = $region20
        $region19: #{tpu_custom_call.1} parent=11 // pred_region
          %p214 = scmp.lt.s32.totalorder %s28, 0
          %s215 = scalar_select %p214, %s28, 0
          %s216 = scalar_lea.vmem %s2, %s215
        $region20: #{tpu_custom_call.1} parent=11 // pred_fallthru
          _
        // Predicated region
        $region21: #{tpu_custom_call.1} parent=11 // pred_check
          %p217 = pneg %p134
        $region22: #{tpu_custom_call.1} parent=11 // pred_check_branch
          %219 = sbr.rel (%p217) target = $region24
        $region23: #{tpu_custom_call.1} parent=11 // pred_region
          %s220 = smul.u32 4, %s28
          %s222 = ssub.s32 256, 256
          %223 = vsyncadd [#allocation7], %s222
          %s224 = smul.addr %s220, 64
          %s225 = scalar_lea.hbm %s3, %s224
          %s226 = sshll.u32 [#allocation8], 4
          %s227 = int_to_ptr.vmem [resolvable:$true] %s226
          %232 = dma.hbm_to_vmem [thread:$0]  %s225, 256, %s227, [#allocation7], 64, 64, 4
        $region24: #{tpu_custom_call.1} parent=11 // pred_fallthru
          _
        // Predicated region
        $region25: #{tpu_custom_call.1} parent=11 // pred_check
          %p233 = pneg %p155
        $region26: #{tpu_custom_call.1} parent=11 // pred_check_branch
          %235 = sbr.rel (%p233) target = $region28
        $region27: #{tpu_custom_call.1} parent=11 // pred_region
          _
        $region28: #{tpu_custom_call.1} parent=11 // pred_fallthru
          _
      $region12: #{tpu_custom_call.1} parent=5 // pred_fallthru
        _
      %p236 = scmp.lt.s32.totalorder %s18, 2
      // Predicated region
      $region29: #{tpu_custom_call.1} parent=5 // pred_check
        %p237 = pneg %p236
      $region30: #{tpu_custom_call.1} parent=5 // pred_check_branch
        %239 = sbr.rel (%p237) target = $region32
      $region31: #{tpu_custom_call.1} parent=5 // pred_region
        // Predicated region
        $region33: #{tpu_custom_call.1} parent=31 // pred_check
          %p240 = pneg %p50
        $region34: #{tpu_custom_call.1} parent=31 // pred_check_branch
          %242 = sbr.rel (%p240) target = $region36
        $region35: #{tpu_custom_call.1} parent=31 // pred_region
          %s243 = sand.u32 %s40, 1
          %s244 = scalar_lea.sflag [#allocation4], %s243
          %s245 = sand.u32 %s40, 1
          %s246 = smul.addr %s245, 4
          %s247 = scalar_lea.vmem [#allocation3], %s246
          %s249 = ssub.s32 64, 64
          %250 = vsyncadd %s244, %s249
          %s251 = smul.addr %s25, 64
          %s252 = scalar_lea.hbm %s0, %s251
          %s254 = sshll.u32 %s247, 4
          %s255 = int_to_ptr.vmem [resolvable:$true] %s254
          %257 = dma.hbm_to_vmem [thread:$0]  %s252, 64, %s255, %s244
        $region36: #{tpu_custom_call.1} parent=31 // pred_fallthru
          _
      $region32: #{tpu_custom_call.1} parent=5 // pred_fallthru
        _
      %p258 = scmp.le.s32.totalorder 1, %s18
      %p259 = scmp.lt.s32.totalorder %s18, 3
      %p260 = pnand %p258, %p259
      %p261 = pneg %p260
      // Predicated region
      $region37: #{tpu_custom_call.1} parent=5 // pred_check
        _
      $region38: #{tpu_custom_call.1} parent=5 // pred_check_branch
        %263 = sbr.rel (%p260) target = $region40
      $region39: #{tpu_custom_call.1} parent=5 // pred_region
        %s264 = ssub.s32 %s18, 1
        %s265 = sand.u32 %s43, 1
        %s266 = scalar_lea.sflag [#allocation4], %s265
        %s267 = sand.u32 %s43, 1
        %s268 = smul.addr %s267, 4
        %s269 = scalar_lea.vmem [#allocation3], %s268
        // Predicated region
        $region41: #{tpu_custom_call.1} parent=39 // pred_check
          %p270 = pneg %p56
        $region42: #{tpu_custom_call.1} parent=39 // pred_check_branch
          %272 = sbr.rel (%p270) target = $region44
        $region43: #{tpu_custom_call.1} parent=39 // pred_region
          %273 = dma.done %s266, 64
        $region44: #{tpu_custom_call.1} parent=39 // pred_fallthru
          _
        // Predicated region
        $region45: #{tpu_custom_call.1} parent=39 // pred_check
          %p274 = pneg %p82
        $region46: #{tpu_custom_call.1} parent=39 // pred_check_branch
          %276 = sbr.rel (%p274) target = $region48
        $region47: #{tpu_custom_call.1} parent=39 // pred_region
          %277 = dma.done [#allocation7], 256
        $region48: #{tpu_custom_call.1} parent=39 // pred_fallthru
          _
        // Predicated region
        $region49: #{tpu_custom_call.1} parent=39 // pred_check
          %p278 = pneg %p134
        $region50: #{tpu_custom_call.1} parent=39 // pred_check_branch
          %280 = sbr.rel (%p278) target = $region52
        $region51: #{tpu_custom_call.1} parent=39 // pred_region
          %281 = dma.done [#allocation7], 256
        $region52: #{tpu_custom_call.1} parent=39 // pred_fallthru
          _
        %s282 = sand.u32 %s43, 1
        %s283 = scalar_lea.sflag [#allocation4], %s282
        %s284 = sand.u32 %s43, 1
        %s285 = smul.addr %s284, 4
        %s286 = scalar_lea.vmem [#allocation3], %s285
        %p287 = pneg %p56
        %p288 = pneg %p53
        %p289 = pneg %p82
        %p290 = pneg %p79
        %p291 = scmp.lt.s32.totalorder %s28, 0
        %s292 = scalar_select %p291, %s28, 0
        %s293 = scalar_lea.vmem %s2, %s292
        %p294 = pneg %p108
        %p295 = pneg %p105
        %p296 = pneg %p134
        %p297 = pneg %p131
        %p298 = pneg %p155
        %p299 = pneg %p152
        %p300 = pneg %p181
        %p301 = pneg %p178
        %s302 = sand.u32 %s168, 1
        %s303 = scalar_lea.sflag [#allocation5], %s302
        %s304 = sand.u32 %s168, 1
        %s305 = smul.addr %s304, 8
        %s306 = scalar_lea.vmem [#allocation9], %s305
        %p307 = scmp.lt.s32.totalorder %s28, 0
        %s308 = scalar_select %p307, %s28, 0
        %s309 = scalar_lea.vmem %s2, %s308
        %s310 = smul.u32 4, %s28
        %p312 = scmp.eq.s32.totalorder %s28, 0
        // Predicated region
        $region53: #{tpu_custom_call.1} parent=39 // pred_check
          %p313 = pneg %p312
        $region54: #{tpu_custom_call.1} parent=39 // pred_check_branch
          %315 = sbr.rel (%p313) target = $region56
        $region55: #{tpu_custom_call.1} parent=39 // pred_region
          %vm316 = vcmask 261120
          %317 = vst.msk [vmem:[#allocation2] sm:$0xff] %vm316, 0.0
        $region56: #{tpu_custom_call.1} parent=39 // pred_fallthru
          _
        %v318 = vld [vmem:[%s269] sm:$0xf]
        %v319 = vld [vmem:[#allocation6] sm:$0xf]
        %v320 = vld [vmem:[#allocation6 + $0x4] sm:$0xf]
        %v321 = vld [vmem:[#allocation6 + $0x8] sm:$0xf]
        %v322 = vld [vmem:[#allocation6 + $0xc] sm:$0xf]
        %v323 = vld [vmem:[%s309] sm:$0x1]
        %v325 = vlaneseq
        %v326 = vshrl.u32 %v325, 7
        %v327 = vsub.s32 0, %v326
        %v328 = vrot.slane %v323, %v327
        %v334 = vunpack.c.l.b16 %v319
        %v335 = vunpack.c.l.b16 %v320
        %v336 = vunpack.c.l.b16 %v321
        %v337 = vunpack.c.l.b16 %v322
        %v338 = vpack.c.b16 %v335, %v334
        %v339 = vpack.c.b16 %v337, %v336
        %vm342 = vcmask 261120
        %v344 = vsel %vm342, %v318, 0
        %346 = vmatprep.subr.bf16.mxu0 0
        %347 = vmatpush1.bf16.msra.mxu0 0
        %348 = vmatprep.subr.bf16.mxu0 0
        %349 = vmatpush1.bf16.msra.mxu0 0
        %350 = vmatprep.subr.bf16.mxu0 0
        %351 = vmatpush1.bf16.msra.mxu0 0
        %352 = vmatprep.subr.bf16.mxu0 0
        %353 = vmatpush1.bf16.msra.mxu0 0
        %354 = vmatprep.subr.bf16.mxu0 0
        %355 = vmatpush1.bf16.msra.mxu0 0
        %356 = vmatprep.subr.bf16.mxu0 0
        %357 = vmatpush1.bf16.msra.mxu0 0
        %358 = vmatprep.subr.bf16.mxu0 0
        %359 = vmatpush1.bf16.msra.mxu0 %v339
        %360 = vmatprep.subr.bf16.mxu0 0
        %361 = vmatpush1.bf16.msra.mxu0 %v338
        %362 = vmatprep.subr.bf16.mxu0 0
        %363 = vmatpush2.bf16.msra.mxu0 0
        %364 = vmatprep.subr.bf16.mxu0 0
        %365 = vmatpush2.bf16.msra.mxu0 0
        %366 = vmatprep.subr.bf16.mxu0 0
        %367 = vmatpush2.bf16.msra.mxu0 0
        %368 = vmatprep.subr.bf16.mxu0 0
        %369 = vmatpush2.bf16.msra.mxu0 0
        %370 = vmatprep.subr.bf16.mxu0 0
        %371 = vmatpush2.bf16.msra.mxu0 0
        %372 = vmatprep.subr.bf16.mxu0 0
        %373 = vmatpush2.bf16.msra.mxu0 0
        %374 = vmatprep.subr.bf16.mxu0 0
        %375 = vmatpush2.bf16.msra.mxu0 0
        %376 = vmatprep.subr.bf16.mxu0 0
        %377 = vmatpush2.bf16.msra.mxu0 0
        %378 = vmatprep.mubr.bf16.mxu0 0
        %379 = vmatmul.mubr.bf16.gmra.mxu0 %v344
        %v380 = vpop.f32.mrf.mxu0
        %v381 = vadd.f32 %v328, %v380
        %v382 = vpop.f32.mrf.mxu0
        %v383 = vpop.f32.mrf.mxu0
        %v384 = vpop.f32.mrf.mxu0
        %385 = vdwg.mxu0
        %v386 = vmax.f32 %v381, 0.0
        %v387 = vld [vmem:[#allocation2] sm:$0xff]
        %v388 = vpack.c.bf16 %v386, %v386
        %v389 = vld [vmem:[#allocation8] sm:$0xf]
        %v390 = vld [vmem:[#allocation8 + $0x4] sm:$0xf]
        %v391 = vld [vmem:[#allocation8 + $0x8] sm:$0xf]
        %v392 = vld [vmem:[#allocation8 + $0xc] sm:$0xf]
        %v397 = vunpack.c.l.b16 %v389
        %v398 = vunpack.c.l.b16 %v390
        %v399 = vunpack.c.l.b16 %v391
        %v400 = vunpack.c.l.b16 %v392
        %v401 = vpack.c.b16 %v398, %v397
        %v402 = vpack.c.b16 %v400, %v399
        %v406 = vsel %vm342, %v388, 0
        %408 = vmatprep.subr.bf16.mxu0 0
        %409 = vmatpush1.bf16.msra.mxu0 0
        %410 = vmatprep.subr.bf16.mxu0 0
        %411 = vmatpush1.bf16.msra.mxu0 0
        %412 = vmatprep.subr.bf16.mxu0 0
        %413 = vmatpush1.bf16.msra.mxu0 0
        %414 = vmatprep.subr.bf16.mxu0 0
        %415 = vmatpush1.bf16.msra.mxu0 0
        %416 = vmatprep.subr.bf16.mxu0 0
        %417 = vmatpush1.bf16.msra.mxu0 0
        %418 = vmatprep.subr.bf16.mxu0 0
        %419 = vmatpush1.bf16.msra.mxu0 0
        %420 = vmatprep.subr.bf16.mxu0 0
        %421 = vmatpush1.bf16.msra.mxu0 %v402
        %422 = vmatprep.subr.bf16.mxu0 0
        %423 = vmatpush1.bf16.msra.mxu0 %v401
        %424 = vmatprep.subr.bf16.mxu0 0
        %425 = vmatpush2.bf16.msra.mxu0 0
        %426 = vmatprep.subr.bf16.mxu0 0
        %427 = vmatpush2.bf16.msra.mxu0 0
        %428 = vmatprep.subr.bf16.mxu0 0
        %429 = vmatpush2.bf16.msra.mxu0 0
        %430 = vmatprep.subr.bf16.mxu0 0
        %431 = vmatpush2.bf16.msra.mxu0 0
        %432 = vmatprep.subr.bf16.mxu0 0
        %433 = vmatpush2.bf16.msra.mxu0 0
        %434 = vmatprep.subr.bf16.mxu0 0
        %435 = vmatpush2.bf16.msra.mxu0 0
        %436 = vmatprep.subr.bf16.mxu0 0
        %437 = vmatpush2.bf16.msra.mxu0 0
        %438 = vmatprep.subr.bf16.mxu0 0
        %439 = vmatpush2.bf16.msra.mxu0 0
        %440 = vmatprep.mubr.bf16.mxu0 0
        %441 = vmatmul.mubr.bf16.gmra.mxu0 %v406
        %v442 = vpop.f32.mrf.mxu0
        %v443 = vadd.f32 0.0, %v442
        %v444 = vpop.f32.mrf.mxu0
        %v445 = vpop.f32.mrf.mxu0
        %v446 = vpop.f32.mrf.mxu0
        %447 = vdwg.mxu0
        %v448 = vadd.f32 %v387, %v443
        %449 = vst.msk [vmem:[#allocation2] sm:$0xff] %vm342, %v448
        // Predicated region
        $region57: #{tpu_custom_call.1} parent=39 // pred_check
          %p450 = pneg %p312
        $region58: #{tpu_custom_call.1} parent=39 // pred_check_branch
          %452 = sbr.rel (%p450) target = $region60
        $region59: #{tpu_custom_call.1} parent=39 // pred_region
          %v453 = vld [vmem:[#allocation2] sm:$0xff]
          %v454 = vld [vmem:[%s4] sm:$0x1]
          %v456 = vlaneseq
          %v457 = vshrl.u32 %v456, 7
          %v458 = vsub.s32 0, %v457
          %v459 = vrot.slane %v454, %v458
          %v461 = vadd.f32 %v453, %v459
          %462 = vst.msk [vmem:[%s306] sm:$0xff] %vm342, %v461
        $region60: #{tpu_custom_call.1} parent=39 // pred_fallthru
          _
        %s463 = sand.u32 %s168, 1
        %s464 = scalar_lea.sflag [#allocation5], %s463
        %s465 = sand.u32 %s168, 1
        %s466 = smul.addr %s465, 8
        %s467 = scalar_lea.vmem [#allocation9], %s466
        // Predicated region
        $region61: #{tpu_custom_call.1} parent=39 // pred_check
          %p468 = pneg %p178
        $region62: #{tpu_custom_call.1} parent=39 // pred_check_branch
          %470 = sbr.rel (%p468) target = $region64
        $region63: #{tpu_custom_call.1} parent=39 // pred_region
          %s472 = ssub.s32 128, 128
          %473 = vsyncadd %s464, %s472
          %s474 = smul.addr %s27, 128
          %s475 = scalar_lea.hbm %s5, %s474
          %s477 = sshll.u32 %s467, 4
          %s478 = int_to_ptr.vmem [resolvable:$true] %s477
          %480 = dma.vmem_to_hbm [thread:$0]  %s478, 128, %s475, %s464
        $region64: #{tpu_custom_call.1} parent=39 // pred_fallthru
          _
      $region40: #{tpu_custom_call.1} parent=5 // pred_fallthru
        _
      %p481 = scmp.le.s32.totalorder 2, %s18
      // Predicated region
      $region65: #{tpu_custom_call.1} parent=5 // pred_check
        %p482 = pneg %p481
      $region66: #{tpu_custom_call.1} parent=5 // pred_check_branch
        %484 = sbr.rel (%p482) target = $region68
      $region67: #{tpu_custom_call.1} parent=5 // pred_region
        %s485 = ssub.s32 %s18, 2
        // Predicated region
        $region69: #{tpu_custom_call.1} parent=67 // pred_check
          %p486 = pneg %p184
        $region70: #{tpu_custom_call.1} parent=67 // pred_check_branch
          %488 = sbr.rel (%p486) target = $region72
        $region71: #{tpu_custom_call.1} parent=67 // pred_region
          %s489 = sand.u32 %s169, 1
          %s490 = scalar_lea.sflag [#allocation5], %s489
          %s491 = sand.u32 %s169, 1
          %s492 = smul.addr %s491, 8
          %s493 = scalar_lea.vmem [#allocation9], %s492
          %494 = dma.done %s490, 128
        $region72: #{tpu_custom_call.1} parent=67 // pred_fallthru
          _
      $region68: #{tpu_custom_call.1} parent=5 // pred_fallthru
        _
    $region6: #{tpu_custom_call.1} parent=1 // loop_footer
      %s22 = sadd.s32 1, %s18
    $region7: #{tpu_custom_call.1} parent=1 // loop_footer_branch
      %17 = sbr.rel target = $region3
    $region8: #{tpu_custom_call.1} parent=1 // loop_exit
      _
    %495 = vsyncpa [#allocation4], 1
    %s496 = scalar_lea.sflag [#allocation4], 1
    %497 = vsyncpa %s496, 1
    %498 = vsyncpa [#allocation7], 1
    %499 = vsyncpa [#allocation5], 1
    %s500 = scalar_lea.sflag [#allocation5], 1
    %501 = vsyncpa %s500, 1

</llo_original>
